<compile_context>
chip_gen: v7x
topology: tpu7x:2x2x1
jax: 0.10.0
libtpu: 0.0.40
codegen_flags: <defaults>
</compile_context>

<pallas_src>
import jax
import jax.numpy as jnp
from jax.experimental import pallas as pl
from jax.experimental.pallas import tpu as pltpu


def _round_up(x, m):
    return ((x + m - 1) // m) * m


def _pick_row_tile(n_rows, n_cols, itemsize, max_rows=512, budget_bytes=16 << 20):
    """Rows per support tile: biggest tile that fits the double-buffer budget."""
    full = _round_up(n_rows, 8)
    if full <= max_rows:
        return full
    by_budget = budget_bytes // (2 * n_cols * itemsize)   # 2x for double buffering
    return max(8, min(max_rows, (by_budget // 8) * 8))


def _sum_gcn_side_kernel(sup_ref, x_ref, w_ref, out_ref, w_acc):
    """One (row_tile, rating) grid step of  sum_i S_i @ (X @ Wcum_i)."""
    s = pl.program_id(1)

    @pl.when(s == 0)
    def _():
        w_acc[...] = jnp.zeros_like(w_acc)
        out_ref[...] = jnp.zeros_like(out_ref)

    # Running cumulative weight  Wcum_s = sum_{i <= s} W_i   (kept in f32).
    w_acc[...] += w_ref[...]

    # tmp = X_other @ Wcum_s   (small matmul; bf16 operands, f32 accumulate).
    tmp = jnp.dot(x_ref[...], w_acc[...].astype(x_ref.dtype),
                  preferred_element_type=jnp.float32)

    # hidden_tile += support_tile_s @ tmp   (dominant MXU matmul; f32 acc in out).
    out_ref[...] += jnp.dot(sup_ref[...], tmp.astype(sup_ref.dtype),
                            preferred_element_type=jnp.float32)

    @pl.when(s == pl.num_programs(1) - 1)
    def _():
        # activation = log(1 + exp(x)) -- literal match to the PyTorch module
        # (overflows to +inf for x >~ 88 exactly like the reference).
        out_ref[...] = jnp.log(1.0 + jnp.exp(out_ref[...]))


def _one_side(sup, x_other, w_chunks, output_dim):
    """sup: [S, N_rows, N_cols] (bf16), x_other: [N_cols, in] (bf16),
    w_chunks: [S, in, out_pad] (f32). Returns softplus(sum_i sup_i @ (x @ Wcum_i))."""
    s_dim, n_rows, n_cols = sup.shape
    input_dim = x_other.shape[1]
    out_pad = w_chunks.shape[-1]

    tile_rows = _pick_row_tile(n_rows, n_cols, sup.dtype.itemsize)
    n_rows_pad = _round_up(n_rows, tile_rows)
    if n_rows_pad != n_rows:
        sup = jnp.pad(sup, ((0, 0), (0, n_rows_pad - n_rows), (0, 0)))

    grid = (n_rows_pad // tile_rows, s_dim)

    # VMEM estimate: double-buffered support tile + weight chunk + inputs,
    # resident f32 output tile, f32 w_acc scratch. Cap v7x-safe (< 64 MiB).
    est = (2 * tile_rows * _round_up(n_cols, 128) * sup.dtype.itemsize
           + 2 * input_dim * out_pad * 4
           + 2 * _round_up(n_cols, 8) * _round_up(input_dim, 128) * x_other.dtype.itemsize
           + 2 * tile_rows * out_pad * 4
           + input_dim * out_pad * 4)
    vmem_limit = min(48 * 1024 * 1024,
                     max(32 * 1024 * 1024, int(1.5 * est) + (2 << 20)))

    out = pl.pallas_call(
        _sum_gcn_side_kernel,
        out_shape=jax.ShapeDtypeStruct((n_rows_pad, out_pad), jnp.float32),
        grid_spec=pltpu.PrefetchScalarGridSpec(
            num_scalar_prefetch=0,
            grid=grid,
            in_specs=[
                # support row tile for rating s
                pl.BlockSpec((pl.Squeezed(), tile_rows, n_cols),
                             lambda r, s: (s, r, 0)),
                # opposite-side features (constant block -> fetched once)
                pl.BlockSpec((n_cols, input_dim), lambda r, s: (0, 0)),
                # weight chunk for rating s
                pl.BlockSpec((pl.Squeezed(), input_dim, out_pad),
                             lambda r, s: (s, 0, 0)),
            ],
            out_specs=pl.BlockSpec((tile_rows, out_pad), lambda r, s: (r, 0)),
            scratch_shapes=[pltpu.VMEM((input_dim, out_pad), jnp.float32)],
        ),
        compiler_params=pltpu.CompilerParams(
            dimension_semantics=("parallel", "arbitrary"),
            vmem_limit_bytes=vmem_limit,
        ),
    )(sup, x_other, w_chunks)

    return out[:n_rows, :output_dim]


def sum_gcn_encoder(user_supports, item_supports, user_inputs, item_inputs,
                    weight, num_support, output_dim,
                    compute_dtype=jnp.bfloat16):
    """Pallas implementation of SumGCNEncoder.forward (eval mode, use_bias=False)."""
    input_dim = weight.shape[0]
    out_pad = _round_up(output_dim, 128)

    # Per-rating weight chunks [S, in, out_pad] (f32, zero-padded output lanes);
    # the cumulative sum is formed inside the kernel.
    w_chunks = jnp.transpose(
        weight.reshape(input_dim, num_support, output_dim), (1, 0, 2))
    w_chunks = jnp.pad(
        w_chunks, ((0, 0), (0, 0), (0, out_pad - output_dim))).astype(jnp.float32)

    usup = jnp.stack(user_supports, axis=0).astype(compute_dtype)   # [S, N_u, N_v]
    isup = jnp.stack(item_supports, axis=0).astype(compute_dtype)   # [S, N_v, N_u]
    ux = user_inputs.astype(compute_dtype)                          # [N_u, in]
    ix = item_inputs.astype(compute_dtype)                          # [N_v, in]

    # user_hidden = sum_i user_supports[i] @ (item_inputs @ Wcum_i)
    user_out = _one_side(usup, ix, w_chunks, output_dim)
    # item_hidden = sum_i item_supports[i] @ (user_inputs @ Wcum_i)
    item_out = _one_side(isup, ux, w_chunks, output_dim)
    return user_out, item_out


def _reference(user_supports, item_supports, user_inputs, item_inputs,
               weight, num_support, output_dim):
    """Pure-JAX f32 reference mirroring the PyTorch loop exactly."""
    chunks = [weight[:, i * output_dim:(i + 1) * output_dim]
              for i in range(num_support)]
    user_hidden = jnp.zeros((user_inputs.shape[0], output_dim), jnp.float32)
    item_hidden = jnp.zeros((item_inputs.shape[0], output_dim), jnp.float32)
    for i in range(num_support):
        w = sum(chunks[:i + 1])
        tmp_u = user_inputs @ w
        tmp_v = item_inputs @ w
        user_hidden = user_hidden + user_supports[i] @ tmp_v
        item_hidden = item_hidden + item_supports[i] @ tmp_u
    return jnp.log(1.0 + jnp.exp(user_hidden)), jnp.log(1.0 + jnp.exp(item_hidden))


if __name__ == "__main__":
    # Small, module-consistent shapes.
    num_support = 5
    input_dim = 32
    output_dim = 16
    n_users = 16
    n_items = 24

    key = jax.random.PRNGKey(0)
    k_w, k_us, k_is, k_ux, k_ix = jax.random.split(key, 5)

    # Xavier-uniform init for weight [input_dim, output_dim * num_support].
    fan_in, fan_out = input_dim, output_dim * num_support
    bound = (6.0 / (fan_in + fan_out)) ** 0.5
    weight = jax.random.uniform(k_w, (input_dim, output_dim * num_support),
                                jnp.float32, minval=-bound, maxval=bound)

    # Dense stand-ins for the normalized sparse adjacency matrices.
    user_supports = [
        jax.random.uniform(k, (n_users, n_items), jnp.float32) / n_items
        for k in jax.random.split(k_us, num_support)
    ]
    item_supports = [
        jax.random.uniform(k, (n_items, n_users), jnp.float32) / n_users
        for k in jax.random.split(k_is, num_support)
    ]
    user_inputs = jax.random.normal(k_ux, (n_users, input_dim), jnp.float32)
    item_inputs = jax.random.normal(k_ix, (n_items, input_dim), jnp.float32)

    u_out, i_out = sum_gcn_encoder(user_supports, item_supports,
                                   user_inputs, item_inputs,
                                   weight, num_support, output_dim)
    jax.block_until_ready((u_out, i_out))

    u_ref, i_ref = _reference(user_supports, item_supports,
                              user_inputs, item_inputs,
                              weight, num_support, output_dim)
    # bf16 MXU operands with f32 accumulation -> compare at bf16-appropriate tol.
    assert u_out.shape == u_ref.shape and i_out.shape == i_ref.shape
    assert jnp.allclose(u_out, u_ref, rtol=3e-2, atol=3e-2)
    assert jnp.allclose(i_out, i_ref, rtol=3e-2, atol=3e-2)

    print("KERNEL_OK")
</pallas_src>

<mosaic_0001>
module attributes {stable_mosaic.version = 11 : i64} {
  func.func @_sum_gcn_side_kernel(%arg0: i32, %arg1: i32, %arg2: memref<1x16x24xbf16, #tpu.memory_space<vmem>>, %arg3: memref<24x32xbf16, #tpu.memory_space<vmem>>, %arg4: memref<1x32x128xf32, #tpu.memory_space<vmem>>, %arg5: memref<16x128xf32, #tpu.memory_space<vmem>>, %arg6: memref<32x128xf32, #tpu.memory_space<vmem>>) attributes {dimension_semantics = [#tpu.dimension_semantics<parallel>, #tpu.dimension_semantics<arbitrary>], iteration_bounds = array<i64: 1, 5>, scalar_prefetch = 0 : i64, scratch_operands = 1 : i64, tpu.core_type = #tpu.core_type<tc>, window_params = [{transform_indices = @transform_0, window_bounds = array<i64: 1, 16, 24>}, {pipeline_mode = #tpu.pipeline_mode<synchronous>, transform_indices = @transform_1, window_bounds = array<i64: 24, 32>}, {transform_indices = @transform_2, window_bounds = array<i64: 1, 32, 128>}, {transform_indices = @transform_3, window_bounds = array<i64: 16, 128>}]} {
    %c0_i32 = arith.constant 0 : i32
    %0 = arith.cmpi eq, %arg1, %c0_i32 : i32
    %1 = arith.extui %0 : i1 to i32
    %c0_i32_0 = arith.constant 0 : i32
    %2 = arith.cmpi ne, %1, %c0_i32_0 : i32
    scf.if %2 {
      %cst_20 = arith.constant 0.000000e+00 : f32
      %22 = vector.broadcast %cst_20 : f32 to vector<32x128xf32>
      %c0_21 = arith.constant 0 : index
      %c0_22 = arith.constant 0 : index
      %23 = vector.load %arg6[%c0_21, %c0_22] : memref<32x128xf32, #tpu.memory_space<vmem>>, vector<32x128xf32>
      tpu.vector_store %arg6[%c0_21, %c0_22], %22 {strides = array<i32>} : memref<32x128xf32, #tpu.memory_space<vmem>>, vector<32x128xf32>,
      %cst_23 = arith.constant 0.000000e+00 : f32
      %24 = vector.broadcast %cst_23 : f32 to vector<16x128xf32>
      %c0_24 = arith.constant 0 : index
      %c0_25 = arith.constant 0 : index
      %25 = vector.load %arg5[%c0_24, %c0_25] : memref<16x128xf32, #tpu.memory_space<vmem>>, vector<16x128xf32>
      tpu.vector_store %arg5[%c0_24, %c0_25], %24 {strides = array<i32>} : memref<16x128xf32, #tpu.memory_space<vmem>>, vector<16x128xf32>,
    } else {
    }
    %c0 = arith.constant 0 : index
    %c0_1 = arith.constant 0 : index
    %3 = vector.load %arg6[%c0, %c0_1] : memref<32x128xf32, #tpu.memory_space<vmem>>, vector<32x128xf32>
    %c0_2 = arith.constant 0 : index
    %c0_3 = arith.constant 0 : index
    %c0_4 = arith.constant 0 : index
    %4 = vector.load %arg4[%c0_2, %c0_3, %c0_4] : memref<1x32x128xf32, #tpu.memory_space<vmem>>, vector<1x32x128xf32>
    %5 = vector.shape_cast %4 : vector<1x32x128xf32> to vector<32x128xf32>
    %6 = arith.addf %3, %5 : vector<32x128xf32>
    %c0_5 = arith.constant 0 : index
    %c0_6 = arith.constant 0 : index
    %7 = vector.load %arg6[%c0_5, %c0_6] : memref<32x128xf32, #tpu.memory_space<vmem>>, vector<32x128xf32>
    tpu.vector_store %arg6[%c0_5, %c0_6], %6 {strides = array<i32>} : memref<32x128xf32, #tpu.memory_space<vmem>>, vector<32x128xf32>,
    %c0_7 = arith.constant 0 : index
    %c0_8 = arith.constant 0 : index
    %8 = vector.load %arg3[%c0_7, %c0_8] : memref<24x32xbf16, #tpu.memory_space<vmem>>, vector<24x32xbf16>
    %c0_9 = arith.constant 0 : index
    %c0_10 = arith.constant 0 : index
    %9 = vector.load %arg6[%c0_9, %c0_10] : memref<32x128xf32, #tpu.memory_space<vmem>>, vector<32x128xf32>
    %10 = arith.truncf %9 : vector<32x128xf32> to vector<32x128xbf16>
    %cst = arith.constant dense<0.000000e+00> : vector<24x128xf32>
    %11 = tpu.matmul %8, %10, %cst {dimension_numbers = #tpu.dot_dimension_numbers<[1], [0], [0], [1], [0, 0, 1, 1], [], []>} : vector<24x32xbf16>, vector<32x128xbf16>, vector<24x128xf32> -> vector<24x128xf32>
    %c0_11 = arith.constant 0 : index
    %c0_12 = arith.constant 0 : index
    %12 = vector.load %arg5[%c0_11, %c0_12] : memref<16x128xf32, #tpu.memory_space<vmem>>, vector<16x128xf32>
    %c0_13 = arith.constant 0 : index
    %c0_14 = arith.constant 0 : index
    %c0_15 = arith.constant 0 : index
    %13 = vector.load %arg2[%c0_13, %c0_14, %c0_15] : memref<1x16x24xbf16, #tpu.memory_space<vmem>>, vector<1x16x24xbf16>
    %14 = vector.shape_cast %13 : vector<1x16x24xbf16> to vector<16x24xbf16>
    %15 = arith.truncf %11 : vector<24x128xf32> to vector<24x128xbf16>
    %cst_16 = arith.constant dense<0.000000e+00> : vector<16x128xf32>
    %16 = tpu.matmul %14, %15, %cst_16 {dimension_numbers = #tpu.dot_dimension_numbers<[1], [0], [0], [1], [0, 0, 1, 1], [], []>} : vector<16x24xbf16>, vector<24x128xbf16>, vector<16x128xf32> -> vector<16x128xf32>
    %17 = arith.addf %12, %16 : vector<16x128xf32>
    %c0_17 = arith.constant 0 : index
    %c0_18 = arith.constant 0 : index
    %18 = vector.load %arg5[%c0_17, %c0_18] : memref<16x128xf32, #tpu.memory_space<vmem>>, vector<16x128xf32>
    tpu.vector_store %arg5[%c0_17, %c0_18], %17 {strides = array<i32>} : memref<16x128xf32, #tpu.memory_space<vmem>>, vector<16x128xf32>,
    %c4_i32 = arith.constant 4 : i32
    %19 = arith.cmpi eq, %arg1, %c4_i32 : i32
    %20 = arith.extui %19 : i1 to i32
    %c0_i32_19 = arith.constant 0 : i32
    %21 = arith.cmpi ne, %20, %c0_i32_19 : i32
    scf.if %21 {
      %c0_20 = arith.constant 0 : index
      %c0_21 = arith.constant 0 : index
      %22 = vector.load %arg5[%c0_20, %c0_21] : memref<16x128xf32, #tpu.memory_space<vmem>>, vector<16x128xf32>
      %23 = math.exp %22 : vector<16x128xf32>
      %cst_22 = arith.constant 1.000000e+00 : f32
      %24 = vector.broadcast %cst_22 : f32 to vector<16x128xf32>
      %25 = arith.addf %24, %23 : vector<16x128xf32>
      %26 = math.log %25 : vector<16x128xf32>
      %c0_23 = arith.constant 0 : index
      %c0_24 = arith.constant 0 : index
      %27 = vector.load %arg5[%c0_23, %c0_24] : memref<16x128xf32, #tpu.memory_space<vmem>>, vector<16x128xf32>
      tpu.vector_store %arg5[%c0_23, %c0_24], %26 {strides = array<i32>} : memref<16x128xf32, #tpu.memory_space<vmem>>, vector<16x128xf32>,
    } else {
    }
    return
  }
  func.func @transform_0(%arg0: i32, %arg1: i32) -> (i32, i32, i32) {
    %c0_i32 = arith.constant 0 : i32
    %c0_i32_0 = arith.constant 0 : i32
    return %arg1, %arg0, %c0_i32 : i32, i32, i32
  }
  func.func @transform_1(%arg0: i32, %arg1: i32) -> (i32, i32) {
    %c0_i32 = arith.constant 0 : i32
    %c0_i32_0 = arith.constant 0 : i32
    %c0_i32_1 = arith.constant 0 : i32
    return %c0_i32, %c0_i32_0 : i32, i32
  }
  func.func @transform_2(%arg0: i32, %arg1: i32) -> (i32, i32, i32) {
    %c0_i32 = arith.constant 0 : i32
    %c0_i32_0 = arith.constant 0 : i32
    %c0_i32_1 = arith.constant 0 : i32
    return %arg1, %c0_i32, %c0_i32_0 : i32, i32, i32
  }
  func.func @transform_3(%arg0: i32, %arg1: i32) -> (i32, i32) {
    %c0_i32 = arith.constant 0 : i32
    %c0_i32_0 = arith.constant 0 : i32
    return %arg0, %c0_i32 : i32, i32
  }
}

</mosaic_0001>

<llo_original>
// kernel: tpu_custom_call.1
$region0: #{tpu_custom_call.1}
  #allocation0 [shape = 'u32[]', space=smem, size = 0x4, offset = 0x4, fixed_abs, tag = 'smem constant byte address 0x4 - core index']
  #allocation1 [shape = 'u32[144,128]{1,0:T(1,128)}', space=vmem, size = 0x12000, scoped, tag = 'internal scratch']
  #allocation2 [shape = 'f32[32,128]{1,0:T(8,128)}', space=vmem, size = 0x4000, scoped, tag = 'scratch operand']
  %s0 = inlined_call_operand.hbm [shape: bf16[5,16,24], index: 0, kind: input, shape index: {}]
  %s1 = inlined_call_operand.hbm [shape: bf16[24,32], index: 1, kind: input, shape index: {}]
  %s2 = inlined_call_operand.hbm [shape: f32[5,32,128], index: 2, kind: input, shape index: {}]
  %s3 = inlined_call_operand.hbm [shape: f32[16,128], index: 3, kind: output, shape index: {}]
  %s4 = sld [smem:[#allocation0]]
  $region65: #{tpu_custom_call.1} parent=0
    _
  %s6 = ssub.s32 1, %s4
  %s7 = scalar_select 0, %s6, %s4
  $region1: #{tpu_custom_call.1} parent=0
    #allocation3 [shape = 'u8[8192]{0}', space=vmem, size = 0x2000, scoped, tag = 'input window, operand 0']
    #allocation4 [shape = 's32[2]{0}', space=sflag, size = 0x8, scoped, tag = 'scoped memory for tpu_custom_call.1']
    #allocation5 [shape = 's32[2]{0}', space=sflag, size = 0x8, scoped, tag = 'scoped memory for tpu_custom_call.1']
    #allocation6 [shape = 'u8[6144]{0}', space=vmem, size = 0x1800, scoped, tag = 'input window, operand 1, single buffered']
    #allocation7 [shape = 's32[1]{0}', space=sflag, size = 0x4, scoped, tag = 'scoped memory for tpu_custom_call.1']
    #allocation8 [shape = 'u8[32768]{0}', space=vmem, size = 0x8000, scoped, tag = 'input window, operand 2']
    #allocation9 [shape = 'u8[8192]{0}', space=vmem, size = 0x2000, scoped, tag = 'output window, operand 0, single buffered']
    %8 = vsyncpa [#allocation4], 0
    %s9 = scalar_lea.sflag [#allocation4], 1
    %10 = vsyncpa %s9, 0
    %11 = vsyncpa [#allocation7], 0
    %12 = vsyncpa [#allocation5], 0
    loop: start=0, step=1, limit=7
    $region2: #{tpu_custom_call.1} parent=1 // loop_pre_header
      _
    $region3: #{tpu_custom_call.1} parent=1 // loop_header
      %s14 = sphi 0, %s18
      %p15 = scmp.ge.s32.totalorder %s14, 7
      %s21 = sphi 0, %s33
      %s22 = sphi 0, %s29
      %s23 = sphi 0, %s21
      %s24 = sphi 0, %s22
      %s25 = sphi 0, %s23
      %s26 = sphi 0, %s24
      %s38 = sphi 0, %s40
      %s41 = sphi 0, %s38
      %s42 = sphi 0, %s41
      %s58 = sphi 0, %s42
      %s62 = sphi 0, %s62
      %s64 = sphi 0, %s62
      %s65 = sphi 0, %s64
      %s79 = sphi 0, %s65
      %s85 = sphi 0, %s87
      %s88 = sphi 0, %s85
      %s89 = sphi 0, %s88
      %s105 = sphi 0, %s89
      %s111 = sphi 0, %s113
      %s114 = sphi 0, %s111
      %s115 = sphi 0, %s114
      %s131 = sphi 0, %s115
    $region4: #{tpu_custom_call.1} parent=1 // loop_header_branch
      %17 = sbr.rel (%p15) target = $region8
    $region5: #{tpu_custom_call.1} parent=1 // loop_body
      %s19 = ssub.s32 %s14, 1
      %s20 = ssub.s32 %s14, 2
      %s27 = sadd.s32 1, %s22
      %p28 = scmp.ge.s32.totalorder %s27, 5
      %s29 = scalar_select %p28, 0, %s27
      %s30 = sadd.s32 1, %s21
      %s31 = scalar_select %p28, %s30, %s21
      %p32 = scmp.ge.s32.totalorder %s31, 1
      %s33 = scalar_select %p32, 0, %s31
      %s34 = ssub.s32 %s22, %s29
      %s35 = ssub.s32 %s21, %s33
      %s36 = sor.u32 %s34, %s35
      %p37 = scmp.eq.s32.totalorder %s36, 0
      %s39 = sadd.s32 %s38, 1
      %s40 = scalar_select %p37, %s38, %s39
      %p43 = pneg %p37
      %p44 = scmp.eq.s32.totalorder %s14, 4
      %p45 = por %p43, %p44
      %p46 = scmp.ne.s32.totalorder %s38, %s41
      %p47 = scmp.eq.s32.totalorder %s14, 0
      %p48 = por %p46, %p47
      %p49 = scmp.ne.s32.totalorder %s38, %s41
      %p50 = scmp.eq.s32.totalorder %s19, 4
      %p51 = por %p49, %p50
      %p52 = scmp.ne.s32.totalorder %s41, %s42
      %p53 = scmp.eq.s32.totalorder %s19, 0
      %p54 = por %p52, %p53
      %p55 = scmp.ne.s32.totalorder %s41, %s42
      %p56 = scmp.eq.s32.totalorder %s20, 4
      %p57 = por %p55, %p56
      %p59 = scmp.ne.s32.totalorder %s42, %s58
      %p60 = scmp.eq.s32.totalorder %s20, 0
      %p61 = por %p59, %p60
      %s63 = sadd.s32 %s62, 1
      %p66 = scmp.eq.s32.totalorder %s14, 4
      %p67 = scmp.ne.s32.totalorder %s62, %s64
      %p68 = scmp.eq.s32.totalorder %s14, 0
      %p69 = por %p67, %p68
      %p70 = scmp.ne.s32.totalorder %s62, %s64
      %p71 = scmp.eq.s32.totalorder %s19, 4
      %p72 = por %p70, %p71
      %p73 = scmp.ne.s32.totalorder %s64, %s65
      %p74 = scmp.eq.s32.totalorder %s19, 0
      %p75 = por %p73, %p74
      %p76 = scmp.ne.s32.totalorder %s64, %s65
      %p77 = scmp.eq.s32.totalorder %s20, 4
      %p78 = por %p76, %p77
      %p80 = scmp.ne.s32.totalorder %s65, %s79
      %p81 = scmp.eq.s32.totalorder %s20, 0
      %p82 = por %p80, %p81
      %s83 = ssub.s32 %s22, %s29
      %p84 = scmp.eq.s32.totalorder %s83, 0
      %s86 = sadd.s32 %s85, 1
      %s87 = scalar_select %p84, %s85, %s86
      %p90 = pneg %p84
      %p91 = scmp.eq.s32.totalorder %s14, 4
      %p92 = por %p90, %p91
      %p93 = scmp.ne.s32.totalorder %s85, %s88
      %p94 = scmp.eq.s32.totalorder %s14, 0
      %p95 = por %p93, %p94
      %p96 = scmp.ne.s32.totalorder %s85, %s88
      %p97 = scmp.eq.s32.totalorder %s19, 4
      %p98 = por %p96, %p97
      %p99 = scmp.ne.s32.totalorder %s88, %s89
      %p100 = scmp.eq.s32.totalorder %s19, 0
      %p101 = por %p99, %p100
      %p102 = scmp.ne.s32.totalorder %s88, %s89
      %p103 = scmp.eq.s32.totalorder %s20, 4
      %p104 = por %p102, %p103
      %p106 = scmp.ne.s32.totalorder %s89, %s105
      %p107 = scmp.eq.s32.totalorder %s20, 0
      %p108 = por %p106, %p107
      %s109 = ssub.s32 %s21, %s33
      %p110 = scmp.eq.s32.totalorder %s109, 0
      %s112 = sadd.s32 %s111, 1
      %s113 = scalar_select %p110, %s111, %s112
      %p116 = pneg %p110
      %p117 = scmp.eq.s32.totalorder %s14, 4
      %p118 = por %p116, %p117
      %p119 = scmp.ne.s32.totalorder %s111, %s114
      %p120 = scmp.eq.s32.totalorder %s14, 0
      %p121 = por %p119, %p120
      %p122 = scmp.ne.s32.totalorder %s111, %s114
      %p123 = scmp.eq.s32.totalorder %s19, 4
      %p124 = por %p122, %p123
      %p125 = scmp.ne.s32.totalorder %s114, %s115
      %p126 = scmp.eq.s32.totalorder %s19, 0
      %p127 = por %p125, %p126
      %p128 = scmp.ne.s32.totalorder %s114, %s115
      %p129 = scmp.eq.s32.totalorder %s20, 4
      %p130 = por %p128, %p129
      %p132 = scmp.ne.s32.totalorder %s115, %s131
      %p133 = scmp.eq.s32.totalorder %s20, 0
      %p134 = por %p132, %p133
      %p135 = scmp.le.s32.totalorder 1, %s14
      %p136 = scmp.lt.s32.totalorder %s14, 6
      %p137 = pnand %p135, %p136
      %p138 = pneg %p137
      // Predicated region
      $region9: #{tpu_custom_call.1} parent=5 // pred_check
        _
      $region10: #{tpu_custom_call.1} parent=5 // pred_check_branch
        %140 = sbr.rel (%p137) target = $region12
      $region11: #{tpu_custom_call.1} parent=5 // pred_region
        %s141 = ssub.s32 %s14, 1
        // Predicated region
        $region13: #{tpu_custom_call.1} parent=11 // pred_check
          %p142 = pneg %p75
        $region14: #{tpu_custom_call.1} parent=11 // pred_check_branch
          %144 = sbr.rel (%p142) target = $region16
        $region15: #{tpu_custom_call.1} parent=11 // pred_region
          %s146 = ssub.s32 192, 192
          %147 = vsyncadd [#allocation7], %s146
          %s148 = sshll.u32 [#allocation6], 4
          %s149 = int_to_ptr.vmem [resolvable:$true] %s148
          %154 = dma.hbm_to_vmem [thread:$0]  %s1, 192, %s149, [#allocation7], 64, 64, 4
        $region16: #{tpu_custom_call.1} parent=11 // pred_fallthru
          _
      $region12: #{tpu_custom_call.1} parent=5 // pred_fallthru
        _
      %p155 = scmp.lt.s32.totalorder %s14, 5
      // Predicated region
      $region17: #{tpu_custom_call.1} parent=5 // pred_check
        %p156 = pneg %p155
      $region18: #{tpu_custom_call.1} parent=5 // pred_check_branch
        %158 = sbr.rel (%p156) target = $region20
      $region19: #{tpu_custom_call.1} parent=5 // pred_region
        // Predicated region
        $region21: #{tpu_custom_call.1} parent=19 // pred_check
          %p159 = pneg %p48
        $region22: #{tpu_custom_call.1} parent=19 // pred_check_branch
          %161 = sbr.rel (%p159) target = $region24
        $region23: #{tpu_custom_call.1} parent=19 // pred_region
          %s162 = sand.u32 %s14, 1
          %s163 = scalar_lea.sflag [#allocation4], %s162
          %s164 = sand.u32 %s38, 1
          %s165 = smul.addr %s164, 8
          %s166 = scalar_lea.vmem [#allocation3], %s165
          %s167 = smul.u32 2, %s21
          %s169 = ssub.s32 128, 128
          %170 = vsyncadd %s163, %s169
          %s171 = smul.addr %s22, 2
          %s172 = sadd.s32 %s167, %s171
          %s173 = smul.addr %s172, 64
          %s174 = scalar_lea.hbm %s0, %s173
          %s175 = sshll.u32 %s166, 4
          %s176 = int_to_ptr.vmem [resolvable:$true] %s175
          %181 = dma.hbm_to_vmem [thread:$0]  %s174, 128, %s176, %s163, 64, 64, 4
        $region24: #{tpu_custom_call.1} parent=19 // pred_fallthru
          _
        // Predicated region
        $region25: #{tpu_custom_call.1} parent=19 // pred_check
          %p182 = pneg %p95
        $region26: #{tpu_custom_call.1} parent=19 // pred_check_branch
          %184 = sbr.rel (%p182) target = $region28
        $region27: #{tpu_custom_call.1} parent=19 // pred_region
          %s185 = sand.u32 %s14, 1
          %s186 = scalar_lea.sflag [#allocation4], %s185
          %s187 = sand.u32 %s85, 1
          %s188 = smul.addr %s187, 32
          %s189 = scalar_lea.vmem [#allocation8], %s188
          %s191 = ssub.s32 512, 512
          %192 = vsyncadd %s186, %s191
          %s193 = smul.addr %s22, 4
          %s194 = smul.addr %s193, 128
          %s195 = scalar_lea.hbm %s2, %s194
          %s196 = sshll.u32 %s189, 4
          %s197 = int_to_ptr.vmem [resolvable:$true] %s196
          %202 = dma.hbm_to_vmem [thread:$0]  %s195, 512, %s197, %s186, 128, 128, 8
        $region28: #{tpu_custom_call.1} parent=19 // pred_fallthru
          _
      $region20: #{tpu_custom_call.1} parent=5 // pred_fallthru
        _
      %p203 = scmp.le.s32.totalorder 1, %s14
      %p204 = scmp.lt.s32.totalorder %s14, 6
      %p205 = pnand %p203, %p204
      %p206 = pneg %p205
      // Predicated region
      $region29: #{tpu_custom_call.1} parent=5 // pred_check
        _
      $region30: #{tpu_custom_call.1} parent=5 // pred_check_branch
        %208 = sbr.rel (%p205) target = $region32
      $region31: #{tpu_custom_call.1} parent=5 // pred_region
        %s209 = ssub.s32 %s14, 1
        %s210 = sand.u32 %s19, 1
        %s211 = scalar_lea.sflag [#allocation4], %s210
        %s212 = sand.u32 %s41, 1
        %s213 = smul.addr %s212, 8
        %s214 = scalar_lea.vmem [#allocation3], %s213
        // Predicated region
        $region33: #{tpu_custom_call.1} parent=31 // pred_check
          %p215 = pneg %p54
        $region34: #{tpu_custom_call.1} parent=31 // pred_check_branch
          %217 = sbr.rel (%p215) target = $region36
        $region35: #{tpu_custom_call.1} parent=31 // pred_region
          %218 = dma.done %s211, 128
        $region36: #{tpu_custom_call.1} parent=31 // pred_fallthru
          _
        // Predicated region
        $region37: #{tpu_custom_call.1} parent=31 // pred_check
          %p219 = pneg %p75
        $region38: #{tpu_custom_call.1} parent=31 // pred_check_branch
          %221 = sbr.rel (%p219) target = $region40
        $region39: #{tpu_custom_call.1} parent=31 // pred_region
          %222 = dma.done [#allocation7], 192
        $region40: #{tpu_custom_call.1} parent=31 // pred_fallthru
          _
        %s223 = sand.u32 %s19, 1
        %s224 = scalar_lea.sflag [#allocation4], %s223
        %s225 = sand.u32 %s88, 1
        %s226 = smul.addr %s225, 32
        %s227 = scalar_lea.vmem [#allocation8], %s226
        // Predicated region
        $region41: #{tpu_custom_call.1} parent=31 // pred_check
          %p228 = pneg %p101
        $region42: #{tpu_custom_call.1} parent=31 // pred_check_branch
          %230 = sbr.rel (%p228) target = $region44
        $region43: #{tpu_custom_call.1} parent=31 // pred_region
          %231 = dma.done %s224, 512
        $region44: #{tpu_custom_call.1} parent=31 // pred_fallthru
          _
        %s232 = sand.u32 %s19, 1
        %s233 = scalar_lea.sflag [#allocation4], %s232
        %s234 = sand.u32 %s41, 1
        %s235 = smul.addr %s234, 8
        %s236 = scalar_lea.vmem [#allocation3], %s235
        %p237 = pneg %p54
        %p238 = pneg %p51
        %p239 = pneg %p75
        %p240 = pneg %p72
        %s241 = sand.u32 %s19, 1
        %s242 = scalar_lea.sflag [#allocation4], %s241
        %s243 = sand.u32 %s88, 1
        %s244 = smul.addr %s243, 32
        %s245 = scalar_lea.vmem [#allocation8], %s244
        %p246 = pneg %p101
        %p247 = pneg %p98
        %p248 = pneg %p127
        %p249 = pneg %p124
        %s250 = smul.u32 2, %s23
        %s251 = smul.u32 2, %s23
        %p253 = scmp.eq.s32.totalorder %s24, 0
        // Predicated region
        $region45: #{tpu_custom_call.1} parent=31 // pred_check
          %p254 = pneg %p253
        $region46: #{tpu_custom_call.1} parent=31 // pred_check_branch
          %256 = sbr.rel (%p254) target = $region48
        $region47: #{tpu_custom_call.1} parent=31 // pred_region
          %257 = vst [vmem:[#allocation2] sm:$0xff] 0.0
          %258 = vst [vmem:[#allocation2 + $0x8] sm:$0xff] 0.0
          %259 = vst [vmem:[#allocation2 + $0x10] sm:$0xff] 0.0
          %260 = vst [vmem:[#allocation2 + $0x18] sm:$0xff] 0.0
          %261 = vst [vmem:[#allocation9] sm:$0xff] 0.0
          %262 = vst [vmem:[#allocation9 + $0x8] sm:$0xff] 0.0
        $region48: #{tpu_custom_call.1} parent=31 // pred_fallthru
          _
        %v263 = vld [vmem:[#allocation2] sm:$0xff]
        %v264 = vld [vmem:[#allocation2 + $0x8] sm:$0xff]
        %v265 = vld [vmem:[#allocation2 + $0x10] sm:$0xff]
        %v266 = vld [vmem:[#allocation2 + $0x18] sm:$0xff]
        %v267 = vld [vmem:[%s227] sm:$0xff]
        %v268 = vld [vmem:[%s227 + $0x8] sm:$0xff]
        %v269 = vld [vmem:[%s227 + $0x10] sm:$0xff]
        %v270 = vld [vmem:[%s227 + $0x18] sm:$0xff]
        %v271 = vadd.f32 %v263, %v267
        %v272 = vadd.f32 %v264, %v268
        %v273 = vadd.f32 %v265, %v269
        %v274 = vadd.f32 %v266, %v270
        %275 = vst [vmem:[#allocation2] sm:$0xff] %v271
        %276 = vst [vmem:[#allocation2 + $0x8] sm:$0xff] %v272
        %277 = vst [vmem:[#allocation2 + $0x10] sm:$0xff] %v273
        %278 = vst [vmem:[#allocation2 + $0x18] sm:$0xff] %v274
        %v279 = vld [vmem:[#allocation6] sm:$0xf]
        %v280 = vld [vmem:[#allocation6 + $0x4] sm:$0xf]
        %v281 = vld [vmem:[#allocation6 + $0x8] sm:$0xf]
        %v282 = vld [vmem:[#allocation2] sm:$0xff]
        %v283 = vld [vmem:[#allocation2 + $0x8] sm:$0xff]
        %v284 = vld [vmem:[#allocation2 + $0x10] sm:$0xff]
        %v285 = vld [vmem:[#allocation2 + $0x18] sm:$0xff]
        %v286 = vpack.c.bf16 %v283, %v282
        %v287 = vpack.c.bf16 %v285, %v284
        %v291 = vunpack.c.l.b16 %v279
        %v292 = vunpack.c.l.b16 %v280
        %v293 = vunpack.c.l.b16 %v281
        %v294 = vpack.c.b16 %v292, %v291
        %v295 = vpack.c.b16 %v293, %v293
        %vm296 = vcmask 261120
        %v298 = vsel %vm296, %v294, 0
        %v301 = vsel %vm296, %v295, 0
        %303 = vmatprep.subr.bf16.mxu0 0
        %304 = vmatpush1.bf16.msra.mxu0 %v286
        %305 = vmatprep.subr.bf16.mxu0 0
        %306 = vmatpush1.bf16.msra.mxu0 %v287
        %307 = vmatprep.subr.bf16.mxu0 0
        %308 = vmatpush1.bf16.msra.mxu0 0
        %309 = vmatprep.subr.bf16.mxu0 0
        %310 = vmatpush1.bf16.msra.mxu0 0
        %311 = vmatprep.subr.bf16.mxu0 0
        %312 = vmatpush1.bf16.msra.mxu0 0
        %313 = vmatprep.subr.bf16.mxu0 0
        %314 = vmatpush1.bf16.msra.mxu0 0
        %315 = vmatprep.subr.bf16.mxu0 0
        %316 = vmatpush1.bf16.msra.mxu0 0
        %317 = vmatprep.subr.bf16.mxu0 0
        %318 = vmatpush1.bf16.msra.mxu0 0
        %319 = vmatprep.subr.bf16.mxu0 0
        %320 = vmatpush1.bf16.msra.mxu0 0
        %321 = vmatprep.subr.bf16.mxu0 0
        %322 = vmatpush1.bf16.msra.mxu0 0
        %323 = vmatprep.subr.bf16.mxu0 0
        %324 = vmatpush1.bf16.msra.mxu0 0
        %325 = vmatprep.subr.bf16.mxu0 0
        %326 = vmatpush1.bf16.msra.mxu0 0
        %327 = vmatprep.subr.bf16.mxu0 0
        %328 = vmatpush1.bf16.msra.mxu0 0
        %329 = vmatprep.subr.bf16.mxu0 0
        %330 = vmatpush1.bf16.msra.mxu0 0
        %331 = vmatprep.subr.bf16.mxu0 0
        %332 = vmatpush1.bf16.msra.mxu0 0
        %333 = vmatprep.subr.bf16.mxu0 0
        %334 = vmatpush1.bf16.msra.mxu0 0
        %335 = vmatprep.mubr.bf16.mxu0 0
        %336 = vmatmul.mubr.bf16.gmra.mrb[0].mxu0 %v298
        %v337 = vpop.f32.mrb[0].mxu0
        %v338 = vadd.f32 0.0, %v337
        %v339 = vpop.f32.mrb[0].mxu0
        %v340 = vpop.f32.mrb[0].mxu0
        %v341 = vadd.f32 0.0, %v340
        %v342 = vpop.f32.mrb[0].mxu0
        %343 = vmatprep.mubr.bf16.mxu0 0
        %344 = vmatmul.mubr.bf16.gmra.mrb[0].mxu0 %v301
        %v345 = vpop.f32.mrb[0].mxu0
        %v346 = vadd.f32 0.0, %v345
        %v347 = vpop.f32.mrb[0].mxu0
        %v348 = vpop.f32.mrb[0].mxu0
        %v349 = vpop.f32.mrb[0].mxu0
        %350 = vdwg.mxu0
        %v351 = vld [vmem:[#allocation9] sm:$0xff]
        %v352 = vld [vmem:[#allocation9 + $0x8] sm:$0xff]
        %v353 = vld [vmem:[%s214] sm:$0xf]
        %v354 = vld [vmem:[%s214 + $0x4] sm:$0xf]
        %v355 = vpack.c.bf16 %v341, %v338
        %v356 = vpack.c.bf16 %v346, %v346
        %v359 = vunpack.c.l.b16 %v353
        %v360 = vunpack.c.l.b16 %v354
        %v361 = vpack.c.b16 %v360, %v359
        %vm362 = vcmask 195584
        %v364 = vsel %vm362, %v361, 0
        %vm366 = vcmask 1043456
        %v368 = vsel %vm366, %v356, 0
        %370 = vmatprep.subr.bf16.mxu0 0
        %371 = vmatpush1.bf16.msra.mxu0 %v355
        %372 = vmatprep.subr.bf16.mxu0 0
        %373 = vmatpush1.bf16.msra.mxu0 %v368
        %374 = vmatprep.subr.bf16.mxu0 0
        %375 = vmatpush1.bf16.msra.mxu0 0
        %376 = vmatprep.subr.bf16.mxu0 0
        %377 = vmatpush1.bf16.msra.mxu0 0
        %378 = vmatprep.subr.bf16.mxu0 0
        %379 = vmatpush1.bf16.msra.mxu0 0
        %380 = vmatprep.subr.bf16.mxu0 0
        %381 = vmatpush1.bf16.msra.mxu0 0
        %382 = vmatprep.subr.bf16.mxu0 0
        %383 = vmatpush1.bf16.msra.mxu0 0
        %384 = vmatprep.subr.bf16.mxu0 0
        %385 = vmatpush1.bf16.msra.mxu0 0
        %386 = vmatprep.subr.bf16.mxu0 0
        %387 = vmatpush1.bf16.msra.mxu0 0
        %388 = vmatprep.subr.bf16.mxu0 0
        %389 = vmatpush1.bf16.msra.mxu0 0
        %390 = vmatprep.subr.bf16.mxu0 0
        %391 = vmatpush1.bf16.msra.mxu0 0
        %392 = vmatprep.subr.bf16.mxu0 0
        %393 = vmatpush1.bf16.msra.mxu0 0
        %394 = vmatprep.subr.bf16.mxu0 0
        %395 = vmatpush1.bf16.msra.mxu0 0
        %396 = vmatprep.subr.bf16.mxu0 0
        %397 = vmatpush1.bf16.msra.mxu0 0
        %398 = vmatprep.subr.bf16.mxu0 0
        %399 = vmatpush1.bf16.msra.mxu0 0
        %400 = vmatprep.subr.bf16.mxu0 0
        %401 = vmatpush1.bf16.msra.mxu0 0
        %402 = vmatprep.mubr.bf16.mxu0 0
        %403 = vmatmul.mubr.bf16.gmra.mrb[0].mxu0 %v364
        %v404 = vpop.f32.mrb[0].mxu0
        %v405 = vadd.f32 0.0, %v404
        %v406 = vpop.f32.mrb[0].mxu0
        %v407 = vpop.f32.mrb[0].mxu0
        %v408 = vadd.f32 0.0, %v407
        %v409 = vpop.f32.mrb[0].mxu0
        %410 = vdwg.mxu0
        %v411 = vadd.f32 %v351, %v405
        %v412 = vadd.f32 %v352, %v408
        %413 = vst [vmem:[#allocation9] sm:$0xff] %v411
        %414 = vst [vmem:[#allocation9 + $0x8] sm:$0xff] %v412
        %p415 = scmp.eq.s32.totalorder %s24, 4
        // Predicated region
        $region49: #{tpu_custom_call.1} parent=31 // pred_check
          %p416 = pneg %p415
        $region50: #{tpu_custom_call.1} parent=31 // pred_check_branch
          %418 = sbr.rel (%p416) target = $region52
        $region51: #{tpu_custom_call.1} parent=31 // pred_region
          %v419 = vld [vmem:[#allocation9] sm:$0xff]
          %v420 = vld [vmem:[#allocation9 + $0x8] sm:$0xff]
          %v421 = vmul.f32 %v419, 1.442695
          %v422 = vpow.pop %v421
          %v423 = vmul.f32 %v420, 1.442695
          %v424 = vpow.pop %v423
          %v425 = vadd.f32 %v422, 1.0
          %v426 = vadd.f32 %v424, 1.0
          %v427 = vlog2.pop %v425
          %v428 = vmul.f32 %v427, 0.6931472
          %v429 = vlog2.pop %v426
          %v430 = vmul.f32 %v429, 0.6931472
          %431 = vst [vmem:[#allocation9] sm:$0xff] %v428
          %432 = vst [vmem:[#allocation9 + $0x8] sm:$0xff] %v430
        $region52: #{tpu_custom_call.1} parent=31 // pred_fallthru
          _
        // Predicated region
        $region53: #{tpu_custom_call.1} parent=31 // pred_check
          %p433 = pneg %p124
        $region54: #{tpu_custom_call.1} parent=31 // pred_check_branch
          %435 = sbr.rel (%p433) target = $region56
        $region55: #{tpu_custom_call.1} parent=31 // pred_region
          %s436 = smul.u32 2, %s23
          %s438 = ssub.s32 256, 256
          %439 = vsyncadd [#allocation5], %s438
          %s440 = smul.addr %s436, 128
          %s441 = scalar_lea.hbm %s3, %s440
          %s442 = sshll.u32 [#allocation9], 4
          %s443 = int_to_ptr.vmem [resolvable:$true] %s442
          %448 = dma.vmem_to_hbm [thread:$0]  %s443, 256, %s441, [#allocation5], 128, 128, 8
        $region56: #{tpu_custom_call.1} parent=31 // pred_fallthru
          _
        // Predicated region
        $region57: #{tpu_custom_call.1} parent=31 // pred_check
          %p449 = pneg %p124
        $region58: #{tpu_custom_call.1} parent=31 // pred_check_branch
          %451 = sbr.rel (%p449) target = $region60
        $region59: #{tpu_custom_call.1} parent=31 // pred_region
          %452 = dma.done [#allocation5], 256
        $region60: #{tpu_custom_call.1} parent=31 // pred_fallthru
          _
      $region32: #{tpu_custom_call.1} parent=5 // pred_fallthru
        _
      %p453 = scmp.le.s32.totalorder 2, %s14
      // Predicated region
      $region61: #{tpu_custom_call.1} parent=5 // pred_check
        %p454 = pneg %p453
      $region62: #{tpu_custom_call.1} parent=5 // pred_check_branch
        %456 = sbr.rel (%p454) target = $region64
      $region63: #{tpu_custom_call.1} parent=5 // pred_region
        %s457 = ssub.s32 %s14, 2
      $region64: #{tpu_custom_call.1} parent=5 // pred_fallthru
        _
    $region6: #{tpu_custom_call.1} parent=1 // loop_footer
      %s18 = sadd.s32 1, %s14
    $region7: #{tpu_custom_call.1} parent=1 // loop_footer_branch
      %13 = sbr.rel target = $region3
    $region8: #{tpu_custom_call.1} parent=1 // loop_exit
      _
    %458 = vsyncpa [#allocation4], 1
    %s459 = scalar_lea.sflag [#allocation4], 1
    %460 = vsyncpa %s459, 1
    %461 = vsyncpa [#allocation7], 1
    %462 = vsyncpa [#allocation5], 1
    %s463 = scalar_lea.sflag [#allocation5], 1
    %464 = vsyncpa %s463, 1

</llo_original>
